<compile_context>
chip_gen: v7x
topology: tpu7x:2x2x1
jax: 0.10.0
libtpu: 0.0.40
codegen_flags: <defaults>
</compile_context>

<pallas_src>
import math
import jax
import jax.numpy as jnp
from jax import lax
from jax.experimental import pallas as pl
from jax.experimental.pallas import tpu as pltpu

DROP_P = 0.8
KEEP_P = 1.0 - DROP_P


def _attn_kernel(q_ref, k_ref, v_ref, mask_ref, keep_ref, o_ref):
    # q_ref: (TQ, D), k_ref/v_ref: (S, D), mask_ref/keep_ref: (TQ, S), o_ref: (TQ, D)
    d = q_ref.shape[-1]
    scale = 1.0 / math.sqrt(d)

    # Fold the softmax scale into Q, cast MXU operands to bf16 (f32 accumulate).
    q = (q_ref[...] * scale).astype(jnp.bfloat16)
    k = k_ref[...].astype(jnp.bfloat16)

    # Contract over D on both operands -> no materialized K transpose (no XLU work).
    qk = lax.dot_general(
        q, k,
        dimension_numbers=(((1,), (1,)), ((), ())),
        preferred_element_type=jnp.float32,
    )
    qk = qk + mask_ref[...]

    # Numerically stable softmax numerator; normalization deferred past the PV matmul.
    m = jnp.max(qk, axis=-1, keepdims=True)
    p = jnp.exp(qk - m)                                  # (TQ, S), f32, in [0, 1]
    denom = jnp.sum(p, axis=-1, keepdims=True)           # (TQ, 1), >= 1 (row max -> exp(0)=1)

    # Dropout: keep mask is {0., 1.} (one multiply per score element).
    p_drop = (p * keep_ref[...]).astype(jnp.bfloat16)

    pv = jnp.dot(p_drop, v_ref[...].astype(jnp.bfloat16),
                 preferred_element_type=jnp.float32)     # (TQ, D), f32

    # Row-wise softmax normalization and the 1/keep_p dropout rescale, applied once
    # on the (TQ, D) output instead of twice on the (TQ, S) score tile.
    o_ref[...] = (pv * ((1.0 / KEEP_P) / denom)).astype(o_ref.dtype)


def attention_forward(query, key, value, attn_mask, dropout_key=None, tq=256):
    """query/key/value: (1, 1, S, D) float32; attn_mask: (1, 1, S, S) float32."""
    B, H, S, D = query.shape
    assert B == 1 and H == 1, "kernel handles the single-head single-batch case"
    tq = min(tq, S)
    assert S % tq == 0, "tq must divide the sequence length"

    q2 = query.reshape(S, D)
    k2 = key.reshape(S, D)
    v2 = value.reshape(S, D)
    m2 = attn_mask.reshape(S, S)

    # Dropout mask (training=True, p=0.8) generated outside the kernel; statistically
    # equivalent to torch.dropout but not bit-identical to PyTorch's RNG.
    if dropout_key is None:
        dropout_key = jax.random.PRNGKey(0)
    keep = (jax.random.uniform(dropout_key, (S, S), dtype=jnp.float32)
            < KEEP_P).astype(jnp.float32)

    grid = (S // tq,)
    cost = pl.CostEstimate(
        flops=4 * S * S * D,                 # QK + PV matmuls
        transcendentals=S * S,               # exp
        bytes_accessed=4 * (3 * S * D + 2 * S * S + S * D),
    )

    out = pl.pallas_call(
        _attn_kernel,
        out_shape=jax.ShapeDtypeStruct((S, D), jnp.float32),
        grid=grid,
        in_specs=[
            pl.BlockSpec((tq, D), lambda i: (i, 0)),   # Q tile
            pl.BlockSpec((S, D), lambda i: (0, 0)),    # full K (resident)
            pl.BlockSpec((S, D), lambda i: (0, 0)),    # full V (resident)
            pl.BlockSpec((tq, S), lambda i: (i, 0)),   # mask tile
            pl.BlockSpec((tq, S), lambda i: (i, 0)),   # dropout keep-mask tile
        ],
        out_specs=pl.BlockSpec((tq, D), lambda i: (i, 0)),
        compiler_params=pltpu.CompilerParams(
            dimension_semantics=("parallel",),         # query tiles are independent
        ),
        cost_estimate=cost,
    )(q2, k2, v2, m2, keep)

    return out.reshape(B, H, S, D)


if __name__ == "__main__":
    # Small shapes consistent with the module (original used S = D = 768).
    S, D = 256, 256
    root = jax.random.PRNGKey(0)
    kq, kk, kv, km, kd = jax.random.split(root, 5)
    query = jax.random.normal(kq, (1, 1, S, D), dtype=jnp.float32)
    key_ = jax.random.normal(kk, (1, 1, S, D), dtype=jnp.float32)
    value = jax.random.normal(kv, (1, 1, S, D), dtype=jnp.float32)
    attn_mask = jax.random.normal(km, (1, 1, S, S), dtype=jnp.float32)

    # tq=128 here to exercise a multi-step grid at the small test shape.
    out = attention_forward(query, key_, value, attn_mask, dropout_key=kd, tq=128)
    jax.block_until_ready(out)
    assert out.shape == (1, 1, S, D)
    assert bool(jnp.all(jnp.isfinite(out)))
    print("KERNEL_OK")
</pallas_src>

<mosaic_0001>
module attributes {stable_mosaic.version = 11 : i64} {
  func.func @_attn_kernel(%arg0: i32, %arg1: memref<128x256xf32, #tpu.memory_space<vmem>>, %arg2: memref<256x256xf32, #tpu.memory_space<vmem>>, %arg3: memref<256x256xf32, #tpu.memory_space<vmem>>, %arg4: memref<128x256xf32, #tpu.memory_space<vmem>>, %arg5: memref<128x256xf32, #tpu.memory_space<vmem>>, %arg6: memref<128x256xf32, #tpu.memory_space<vmem>>) attributes {dimension_semantics = [#tpu.dimension_semantics<parallel>], iteration_bounds = array<i64: 2>, scalar_prefetch = 0 : i64, scratch_operands = 0 : i64, tpu.core_type = #tpu.core_type<tc>, window_params = [{transform_indices = @transform_0, window_bounds = array<i64: 128, 256>}, {pipeline_mode = #tpu.pipeline_mode<synchronous>, transform_indices = @transform_1, window_bounds = array<i64: 256, 256>}, {pipeline_mode = #tpu.pipeline_mode<synchronous>, transform_indices = @transform_2, window_bounds = array<i64: 256, 256>}, {transform_indices = @transform_3, window_bounds = array<i64: 128, 256>}, {transform_indices = @transform_4, window_bounds = array<i64: 128, 256>}, {transform_indices = @transform_5, window_bounds = array<i64: 128, 256>}]} {
    %c0 = arith.constant 0 : index
    %c0_0 = arith.constant 0 : index
    %0 = vector.load %arg1[%c0, %c0_0] : memref<128x256xf32, #tpu.memory_space<vmem>>, vector<128x256xf32>
    %cst = arith.constant 6.250000e-02 : f32
    %1 = vector.broadcast %cst : f32 to vector<128x256xf32>
    %2 = arith.mulf %0, %1 : vector<128x256xf32>
    %3 = arith.truncf %2 : vector<128x256xf32> to vector<128x256xbf16>
    %c0_1 = arith.constant 0 : index
    %c0_2 = arith.constant 0 : index
    %4 = vector.load %arg2[%c0_1, %c0_2] : memref<256x256xf32, #tpu.memory_space<vmem>>, vector<256x256xf32>
    %5 = arith.truncf %4 : vector<256x256xf32> to vector<256x256xbf16>
    %cst_3 = arith.constant dense<0.000000e+00> : vector<128x256xf32>
    %6 = tpu.matmul %3, %5, %cst_3 {dimension_numbers = #tpu.dot_dimension_numbers<[1], [1], [0], [0], [0, 0, 1, 0], [], []>} : vector<128x256xbf16>, vector<256x256xbf16>, vector<128x256xf32> -> vector<128x256xf32>
    %c0_4 = arith.constant 0 : index
    %c0_5 = arith.constant 0 : index
    %7 = vector.load %arg4[%c0_4, %c0_5] : memref<128x256xf32, #tpu.memory_space<vmem>>, vector<128x256xf32>
    %8 = arith.addf %6, %7 : vector<128x256xf32>
    %cst_6 = arith.constant dense<0xFF800000> : vector<128xf32>
    %9 = vector.multi_reduction <maximumf>, %8, %cst_6 [1] : vector<128x256xf32> to vector<128xf32>
    %10 = vector.shape_cast %9 : vector<128xf32> to vector<128x1xf32>
    %11 = vector.broadcast %10 : vector<128x1xf32> to vector<128x256xf32>
    %12 = arith.subf %8, %11 : vector<128x256xf32>
    %13 = math.exp %12 : vector<128x256xf32>
    %cst_7 = arith.constant dense<0.000000e+00> : vector<128xf32>
    %14 = vector.multi_reduction <add>, %13, %cst_7 [1] : vector<128x256xf32> to vector<128xf32>
    %15 = vector.shape_cast %14 : vector<128xf32> to vector<128x1xf32>
    %c0_8 = arith.constant 0 : index
    %c0_9 = arith.constant 0 : index
    %16 = vector.load %arg5[%c0_8, %c0_9] : memref<128x256xf32, #tpu.memory_space<vmem>>, vector<128x256xf32>
    %17 = arith.mulf %13, %16 : vector<128x256xf32>
    %18 = arith.truncf %17 : vector<128x256xf32> to vector<128x256xbf16>
    %c0_10 = arith.constant 0 : index
    %c0_11 = arith.constant 0 : index
    %19 = vector.load %arg3[%c0_10, %c0_11] : memref<256x256xf32, #tpu.memory_space<vmem>>, vector<256x256xf32>
    %20 = arith.truncf %19 : vector<256x256xf32> to vector<256x256xbf16>
    %cst_12 = arith.constant dense<0.000000e+00> : vector<128x256xf32>
    %21 = tpu.matmul %18, %20, %cst_12 {dimension_numbers = #tpu.dot_dimension_numbers<[1], [0], [0], [1], [0, 0, 1, 1], [], []>} : vector<128x256xbf16>, vector<256x256xbf16>, vector<128x256xf32> -> vector<128x256xf32>
    %cst_13 = arith.constant 5.000000e+00 : f32
    %22 = vector.broadcast %cst_13 : f32 to vector<128x1xf32>
    %23 = arith.divf %22, %15 : vector<128x1xf32>
    %24 = vector.broadcast %23 : vector<128x1xf32> to vector<128x256xf32>
    %25 = arith.mulf %21, %24 : vector<128x256xf32>
    %c0_14 = arith.constant 0 : index
    %c0_15 = arith.constant 0 : index
    %26 = vector.load %arg6[%c0_14, %c0_15] : memref<128x256xf32, #tpu.memory_space<vmem>>, vector<128x256xf32>
    tpu.vector_store %arg6[%c0_14, %c0_15], %25 {strides = array<i32>} : memref<128x256xf32, #tpu.memory_space<vmem>>, vector<128x256xf32>,
    return
  }
  func.func @transform_0(%arg0: i32) -> (i32, i32) {
    %c0_i32 = arith.constant 0 : i32
    %c0_i32_0 = arith.constant 0 : i32
    return %arg0, %c0_i32 : i32, i32
  }
  func.func @transform_1(%arg0: i32) -> (i32, i32) {
    %c0_i32 = arith.constant 0 : i32
    %c0_i32_0 = arith.constant 0 : i32
    %c0_i32_1 = arith.constant 0 : i32
    return %c0_i32, %c0_i32_0 : i32, i32
  }
  func.func @transform_2(%arg0: i32) -> (i32, i32) {
    %c0_i32 = arith.constant 0 : i32
    %c0_i32_0 = arith.constant 0 : i32
    %c0_i32_1 = arith.constant 0 : i32
    return %c0_i32, %c0_i32_0 : i32, i32
  }
  func.func @transform_3(%arg0: i32) -> (i32, i32) {
    %c0_i32 = arith.constant 0 : i32
    %c0_i32_0 = arith.constant 0 : i32
    return %arg0, %c0_i32 : i32, i32
  }
  func.func @transform_4(%arg0: i32) -> (i32, i32) {
    %c0_i32 = arith.constant 0 : i32
    %c0_i32_0 = arith.constant 0 : i32
    return %arg0, %c0_i32 : i32, i32
  }
  func.func @transform_5(%arg0: i32) -> (i32, i32) {
    %c0_i32 = arith.constant 0 : i32
    %c0_i32_0 = arith.constant 0 : i32
    return %arg0, %c0_i32 : i32, i32
  }
}

</mosaic_0001>

<llo_original>
// kernel: tpu_custom_call.1
$region0: #{tpu_custom_call.1}
  #allocation0 [shape = 'u32[]', space=smem, size = 0x4, offset = 0x4, fixed_abs, tag = 'smem constant byte address 0x4 - core index']
  #allocation1 [shape = 'u32[144,128]{1,0:T(1,128)}', space=vmem, size = 0x12000, scoped, tag = 'internal scratch']
  %s0 = inlined_call_operand.hbm [shape: f32[256,256], index: 0, kind: input, shape index: {}]
  %s1 = inlined_call_operand.hbm [shape: f32[256,256], index: 1, kind: input, shape index: {}]
  %s2 = inlined_call_operand.hbm [shape: f32[256,256], index: 2, kind: input, shape index: {}]
  %s3 = inlined_call_operand.hbm [shape: f32[256,256], index: 3, kind: input, shape index: {}]
  %s4 = inlined_call_operand.hbm [shape: f32[256,256], index: 4, kind: input, shape index: {}]
  %s5 = inlined_call_operand.hbm [shape: f32[256,256], index: 5, kind: output, shape index: {}]
  %s6 = sld [smem:[#allocation0]]
  $region73: #{tpu_custom_call.1} parent=0
    _
  %s8 = ssub.s32 1, %s6
  %s9 = scalar_select 0, %s8, %s6
  $region1: #{tpu_custom_call.1} parent=0
    #allocation2 [shape = 'u8[262144]{0}', space=vmem, size = 0x40000, scoped, tag = 'input window, operand 0']
    #allocation3 [shape = 's32[2]{0}', space=sflag, size = 0x8, scoped, tag = 'scoped memory for tpu_custom_call.1']
    #allocation4 [shape = 's32[2]{0}', space=sflag, size = 0x8, scoped, tag = 'scoped memory for tpu_custom_call.1']
    #allocation5 [shape = 'u8[262144]{0}', space=vmem, size = 0x40000, scoped, tag = 'input window, operand 1, single buffered']
    #allocation6 [shape = 's32[1]{0}', space=sflag, size = 0x4, scoped, tag = 'scoped memory for tpu_custom_call.1']
    #allocation7 [shape = 'u8[262144]{0}', space=vmem, size = 0x40000, scoped, tag = 'input window, operand 2, single buffered']
    #allocation8 [shape = 'u8[262144]{0}', space=vmem, size = 0x40000, scoped, tag = 'input window, operand 3']
    #allocation9 [shape = 's32[2]{0}', space=sflag, size = 0x8, scoped, tag = 'scoped memory for tpu_custom_call.1']
    #allocation10 [shape = 'u8[262144]{0}', space=vmem, size = 0x40000, scoped, tag = 'input window, operand 4']
    #allocation11 [shape = 'u8[262144]{0}', space=vmem, size = 0x40000, scoped, tag = 'output window, operand 0']
    %10 = vsyncpa [#allocation3], 0
    %s11 = scalar_lea.sflag [#allocation3], 1
    %12 = vsyncpa %s11, 0
    %13 = vsyncpa [#allocation6], 0
    %14 = vsyncpa [#allocation9], 0
    %s15 = scalar_lea.sflag [#allocation9], 1
    %16 = vsyncpa %s15, 0
    %17 = vsyncpa [#allocation4], 0
    %s18 = scalar_lea.sflag [#allocation4], 1
    %19 = vsyncpa %s18, 0
    loop: start=0, step=1, limit=4
    $region2: #{tpu_custom_call.1} parent=1 // loop_pre_header
      _
    $region3: #{tpu_custom_call.1} parent=1 // loop_header
      %s21 = sphi 0, %s25
      %p22 = scmp.ge.s32.totalorder %s21, 4
      %s31 = sphi 0, %s33
      %s34 = sphi 0, %s31
      %s35 = sphi 0, %s34
      %s51 = sphi 0, %s35
      %s55 = sphi 0, %s55
      %s57 = sphi 0, %s55
      %s58 = sphi 0, %s57
      %s72 = sphi 0, %s58
      %s76 = sphi 0, %s76
      %s78 = sphi 0, %s76
      %s79 = sphi 0, %s78
      %s93 = sphi 0, %s79
      %s99 = sphi 0, %s101
      %s102 = sphi 0, %s99
      %s103 = sphi 0, %s102
      %s119 = sphi 0, %s103
      %s125 = sphi 0, %s127
      %s128 = sphi 0, %s125
      %s129 = sphi 0, %s128
      %s145 = sphi 0, %s129
      %s151 = sphi 0, %s153
      %s154 = sphi 0, %s151
      %s155 = sphi 0, %s154
      %s171 = sphi 0, %s155
    $region4: #{tpu_custom_call.1} parent=1 // loop_header_branch
      %24 = sbr.rel (%p22) target = $region8
    $region5: #{tpu_custom_call.1} parent=1 // loop_body
      %s26 = ssub.s32 %s21, 1
      %s27 = ssub.s32 %s21, 2
      %s28 = sadd.s32 %s21, 1
      %s29 = ssub.s32 %s21, %s28
      %p30 = scmp.eq.s32.totalorder %s29, 0
      %s32 = sadd.s32 %s31, 1
      %s33 = scalar_select %p30, %s31, %s32
      %p36 = pneg %p30
      %p37 = scmp.eq.s32.totalorder %s21, 1
      %p38 = por %p36, %p37
      %p39 = scmp.ne.s32.totalorder %s31, %s34
      %p40 = scmp.eq.s32.totalorder %s21, 0
      %p41 = por %p39, %p40
      %p42 = scmp.ne.s32.totalorder %s31, %s34
      %p43 = scmp.eq.s32.totalorder %s26, 1
      %p44 = por %p42, %p43
      %p45 = scmp.ne.s32.totalorder %s34, %s35
      %p46 = scmp.eq.s32.totalorder %s26, 0
      %p47 = por %p45, %p46
      %p48 = scmp.ne.s32.totalorder %s34, %s35
      %p49 = scmp.eq.s32.totalorder %s27, 1
      %p50 = por %p48, %p49
      %p52 = scmp.ne.s32.totalorder %s35, %s51
      %p53 = scmp.eq.s32.totalorder %s27, 0
      %p54 = por %p52, %p53
      %s56 = sadd.s32 %s55, 1
      %p59 = scmp.eq.s32.totalorder %s21, 1
      %p60 = scmp.ne.s32.totalorder %s55, %s57
      %p61 = scmp.eq.s32.totalorder %s21, 0
      %p62 = por %p60, %p61
      %p63 = scmp.ne.s32.totalorder %s55, %s57
      %p64 = scmp.eq.s32.totalorder %s26, 1
      %p65 = por %p63, %p64
      %p66 = scmp.ne.s32.totalorder %s57, %s58
      %p67 = scmp.eq.s32.totalorder %s26, 0
      %p68 = por %p66, %p67
      %p69 = scmp.ne.s32.totalorder %s57, %s58
      %p70 = scmp.eq.s32.totalorder %s27, 1
      %p71 = por %p69, %p70
      %p73 = scmp.ne.s32.totalorder %s58, %s72
      %p74 = scmp.eq.s32.totalorder %s27, 0
      %p75 = por %p73, %p74
      %s77 = sadd.s32 %s76, 1
      %p80 = scmp.eq.s32.totalorder %s21, 1
      %p81 = scmp.ne.s32.totalorder %s76, %s78
      %p82 = scmp.eq.s32.totalorder %s21, 0
      %p83 = por %p81, %p82
      %p84 = scmp.ne.s32.totalorder %s76, %s78
      %p85 = scmp.eq.s32.totalorder %s26, 1
      %p86 = por %p84, %p85
      %p87 = scmp.ne.s32.totalorder %s78, %s79
      %p88 = scmp.eq.s32.totalorder %s26, 0
      %p89 = por %p87, %p88
      %p90 = scmp.ne.s32.totalorder %s78, %s79
      %p91 = scmp.eq.s32.totalorder %s27, 1
      %p92 = por %p90, %p91
      %p94 = scmp.ne.s32.totalorder %s79, %s93
      %p95 = scmp.eq.s32.totalorder %s27, 0
      %p96 = por %p94, %p95
      %s97 = ssub.s32 %s21, %s28
      %p98 = scmp.eq.s32.totalorder %s97, 0
      %s100 = sadd.s32 %s99, 1
      %s101 = scalar_select %p98, %s99, %s100
      %p104 = pneg %p98
      %p105 = scmp.eq.s32.totalorder %s21, 1
      %p106 = por %p104, %p105
      %p107 = scmp.ne.s32.totalorder %s99, %s102
      %p108 = scmp.eq.s32.totalorder %s21, 0
      %p109 = por %p107, %p108
      %p110 = scmp.ne.s32.totalorder %s99, %s102
      %p111 = scmp.eq.s32.totalorder %s26, 1
      %p112 = por %p110, %p111
      %p113 = scmp.ne.s32.totalorder %s102, %s103
      %p114 = scmp.eq.s32.totalorder %s26, 0
      %p115 = por %p113, %p114
      %p116 = scmp.ne.s32.totalorder %s102, %s103
      %p117 = scmp.eq.s32.totalorder %s27, 1
      %p118 = por %p116, %p117
      %p120 = scmp.ne.s32.totalorder %s103, %s119
      %p121 = scmp.eq.s32.totalorder %s27, 0
      %p122 = por %p120, %p121
      %s123 = ssub.s32 %s21, %s28
      %p124 = scmp.eq.s32.totalorder %s123, 0
      %s126 = sadd.s32 %s125, 1
      %s127 = scalar_select %p124, %s125, %s126
      %p130 = pneg %p124
      %p131 = scmp.eq.s32.totalorder %s21, 1
      %p132 = por %p130, %p131
      %p133 = scmp.ne.s32.totalorder %s125, %s128
      %p134 = scmp.eq.s32.totalorder %s21, 0
      %p135 = por %p133, %p134
      %p136 = scmp.ne.s32.totalorder %s125, %s128
      %p137 = scmp.eq.s32.totalorder %s26, 1
      %p138 = por %p136, %p137
      %p139 = scmp.ne.s32.totalorder %s128, %s129
      %p140 = scmp.eq.s32.totalorder %s26, 0
      %p141 = por %p139, %p140
      %p142 = scmp.ne.s32.totalorder %s128, %s129
      %p143 = scmp.eq.s32.totalorder %s27, 1
      %p144 = por %p142, %p143
      %p146 = scmp.ne.s32.totalorder %s129, %s145
      %p147 = scmp.eq.s32.totalorder %s27, 0
      %p148 = por %p146, %p147
      %s149 = ssub.s32 %s21, %s28
      %p150 = scmp.eq.s32.totalorder %s149, 0
      %s152 = sadd.s32 %s151, 1
      %s153 = scalar_select %p150, %s151, %s152
      %p156 = pneg %p150
      %p157 = scmp.eq.s32.totalorder %s21, 1
      %p158 = por %p156, %p157
      %p159 = scmp.ne.s32.totalorder %s151, %s154
      %p160 = scmp.eq.s32.totalorder %s21, 0
      %p161 = por %p159, %p160
      %p162 = scmp.ne.s32.totalorder %s151, %s154
      %p163 = scmp.eq.s32.totalorder %s26, 1
      %p164 = por %p162, %p163
      %p165 = scmp.ne.s32.totalorder %s154, %s155
      %p166 = scmp.eq.s32.totalorder %s26, 0
      %p167 = por %p165, %p166
      %p168 = scmp.ne.s32.totalorder %s154, %s155
      %p169 = scmp.eq.s32.totalorder %s27, 1
      %p170 = por %p168, %p169
      %p172 = scmp.ne.s32.totalorder %s155, %s171
      %p173 = scmp.eq.s32.totalorder %s27, 0
      %p174 = por %p172, %p173
      %p175 = scmp.le.s32.totalorder 1, %s21
      %p176 = scmp.lt.s32.totalorder %s21, 3
      %p177 = pnand %p175, %p176
      %p178 = pneg %p177
      // Predicated region
      $region9: #{tpu_custom_call.1} parent=5 // pred_check
        _
      $region10: #{tpu_custom_call.1} parent=5 // pred_check_branch
        %180 = sbr.rel (%p177) target = $region12
      $region11: #{tpu_custom_call.1} parent=5 // pred_region
        %s181 = ssub.s32 %s21, 1
        // Predicated region
        $region13: #{tpu_custom_call.1} parent=11 // pred_check
          %p182 = pneg %p68
        $region14: #{tpu_custom_call.1} parent=11 // pred_check_branch
          %184 = sbr.rel (%p182) target = $region16
        $region15: #{tpu_custom_call.1} parent=11 // pred_region
          %s186 = ssub.s32 8192, 8192
          %187 = vsyncadd [#allocation6], %s186
          %s188 = sshll.u32 [#allocation5], 4
          %s189 = int_to_ptr.vmem [resolvable:$true] %s188
          %194 = dma.hbm_to_vmem [thread:$0]  %s1, 8192, %s189, [#allocation6], 256, 256, 16
        $region16: #{tpu_custom_call.1} parent=11 // pred_fallthru
          _
        // Predicated region
        $region17: #{tpu_custom_call.1} parent=11 // pred_check
          %p195 = pneg %p89
        $region18: #{tpu_custom_call.1} parent=11 // pred_check_branch
          %197 = sbr.rel (%p195) target = $region20
        $region19: #{tpu_custom_call.1} parent=11 // pred_region
          %s199 = ssub.s32 8192, 8192
          %200 = vsyncadd [#allocation6], %s199
          %s201 = sshll.u32 [#allocation7], 4
          %s202 = int_to_ptr.vmem [resolvable:$true] %s201
          %207 = dma.hbm_to_vmem [thread:$0]  %s2, 8192, %s202, [#allocation6], 256, 256, 16
        $region20: #{tpu_custom_call.1} parent=11 // pred_fallthru
          _
      $region12: #{tpu_custom_call.1} parent=5 // pred_fallthru
        _
      %p208 = scmp.lt.s32.totalorder %s21, 2
      // Predicated region
      $region21: #{tpu_custom_call.1} parent=5 // pred_check
        %p209 = pneg %p208
      $region22: #{tpu_custom_call.1} parent=5 // pred_check_branch
        %211 = sbr.rel (%p209) target = $region24
      $region23: #{tpu_custom_call.1} parent=5 // pred_region
        // Predicated region
        $region25: #{tpu_custom_call.1} parent=23 // pred_check
          %p212 = pneg %p41
        $region26: #{tpu_custom_call.1} parent=23 // pred_check_branch
          %214 = sbr.rel (%p212) target = $region28
        $region27: #{tpu_custom_call.1} parent=23 // pred_region
          %s215 = sand.u32 %s31, 1
          %s216 = scalar_lea.sflag [#allocation3], %s215
          %s217 = sand.u32 %s31, 1
          %s218 = smul.addr %s217, 256
          %s219 = scalar_lea.vmem [#allocation2], %s218
          %s220 = smul.u32 16, %s21
          %s222 = ssub.s32 4096, 4096
          %223 = vsyncadd %s216, %s222
          %s224 = smul.addr %s220, 2
          %s225 = smul.addr %s224, 128
          %s226 = scalar_lea.hbm %s0, %s225
          %s227 = sshll.u32 %s219, 4
          %s228 = int_to_ptr.vmem [resolvable:$true] %s227
          %233 = dma.hbm_to_vmem [thread:$0]  %s226, 4096, %s228, %s216, 256, 256, 16
        $region28: #{tpu_custom_call.1} parent=23 // pred_fallthru
          _
        // Predicated region
        $region29: #{tpu_custom_call.1} parent=23 // pred_check
          %p234 = pneg %p109
        $region30: #{tpu_custom_call.1} parent=23 // pred_check_branch
          %236 = sbr.rel (%p234) target = $region32
        $region31: #{tpu_custom_call.1} parent=23 // pred_region
          %s237 = sand.u32 %s21, 1
          %s238 = scalar_lea.sflag [#allocation9], %s237
          %s239 = sand.u32 %s99, 1
          %s240 = smul.addr %s239, 256
          %s241 = scalar_lea.vmem [#allocation8], %s240
          %s242 = smul.u32 16, %s21
          %s244 = ssub.s32 4096, 4096
          %245 = vsyncadd %s238, %s244
          %s246 = smul.addr %s242, 2
          %s247 = smul.addr %s246, 128
          %s248 = scalar_lea.hbm %s3, %s247
          %s249 = sshll.u32 %s241, 4
          %s250 = int_to_ptr.vmem [resolvable:$true] %s249
          %255 = dma.hbm_to_vmem [thread:$0]  %s248, 4096, %s250, %s238, 256, 256, 16
        $region32: #{tpu_custom_call.1} parent=23 // pred_fallthru
          _
        // Predicated region
        $region33: #{tpu_custom_call.1} parent=23 // pred_check
          %p256 = pneg %p135
        $region34: #{tpu_custom_call.1} parent=23 // pred_check_branch
          %258 = sbr.rel (%p256) target = $region36
        $region35: #{tpu_custom_call.1} parent=23 // pred_region
          %s259 = sand.u32 %s21, 1
          %s260 = scalar_lea.sflag [#allocation9], %s259
          %s261 = sand.u32 %s125, 1
          %s262 = smul.addr %s261, 256
          %s263 = scalar_lea.vmem [#allocation10], %s262
          %s264 = smul.u32 16, %s21
          %s266 = ssub.s32 4096, 4096
          %267 = vsyncadd %s260, %s266
          %s268 = smul.addr %s264, 2
          %s269 = smul.addr %s268, 128
          %s270 = scalar_lea.hbm %s4, %s269
          %s271 = sshll.u32 %s263, 4
          %s272 = int_to_ptr.vmem [resolvable:$true] %s271
          %277 = dma.hbm_to_vmem [thread:$0]  %s270, 4096, %s272, %s260, 256, 256, 16
        $region36: #{tpu_custom_call.1} parent=23 // pred_fallthru
          _
      $region24: #{tpu_custom_call.1} parent=5 // pred_fallthru
        _
      %p278 = scmp.le.s32.totalorder 1, %s21
      %p279 = scmp.lt.s32.totalorder %s21, 3
      %p280 = pnand %p278, %p279
      %p281 = pneg %p280
      // Predicated region
      $region37: #{tpu_custom_call.1} parent=5 // pred_check
        _
      $region38: #{tpu_custom_call.1} parent=5 // pred_check_branch
        %283 = sbr.rel (%p280) target = $region40
      $region39: #{tpu_custom_call.1} parent=5 // pred_region
        %s284 = ssub.s32 %s21, 1
        %s285 = sand.u32 %s34, 1
        %s286 = scalar_lea.sflag [#allocation3], %s285
        %s287 = sand.u32 %s34, 1
        %s288 = smul.addr %s287, 256
        %s289 = scalar_lea.vmem [#allocation2], %s288
        // Predicated region
        $region41: #{tpu_custom_call.1} parent=39 // pred_check
          %p290 = pneg %p47
        $region42: #{tpu_custom_call.1} parent=39 // pred_check_branch
          %292 = sbr.rel (%p290) target = $region44
        $region43: #{tpu_custom_call.1} parent=39 // pred_region
          %293 = dma.done %s286, 4096
        $region44: #{tpu_custom_call.1} parent=39 // pred_fallthru
          _
        // Predicated region
        $region45: #{tpu_custom_call.1} parent=39 // pred_check
          %p294 = pneg %p68
        $region46: #{tpu_custom_call.1} parent=39 // pred_check_branch
          %296 = sbr.rel (%p294) target = $region48
        $region47: #{tpu_custom_call.1} parent=39 // pred_region
          %297 = dma.done [#allocation6], 8192
        $region48: #{tpu_custom_call.1} parent=39 // pred_fallthru
          _
        // Predicated region
        $region49: #{tpu_custom_call.1} parent=39 // pred_check
          %p298 = pneg %p89
        $region50: #{tpu_custom_call.1} parent=39 // pred_check_branch
          %300 = sbr.rel (%p298) target = $region52
        $region51: #{tpu_custom_call.1} parent=39 // pred_region
          %301 = dma.done [#allocation6], 8192
        $region52: #{tpu_custom_call.1} parent=39 // pred_fallthru
          _
        %s302 = sand.u32 %s26, 1
        %s303 = scalar_lea.sflag [#allocation9], %s302
        %s304 = sand.u32 %s102, 1
        %s305 = smul.addr %s304, 256
        %s306 = scalar_lea.vmem [#allocation8], %s305
        // Predicated region
        $region53: #{tpu_custom_call.1} parent=39 // pred_check
          %p307 = pneg %p115
        $region54: #{tpu_custom_call.1} parent=39 // pred_check_branch
          %309 = sbr.rel (%p307) target = $region56
        $region55: #{tpu_custom_call.1} parent=39 // pred_region
          %310 = dma.done %s303, 4096
        $region56: #{tpu_custom_call.1} parent=39 // pred_fallthru
          _
        %s311 = sand.u32 %s26, 1
        %s312 = scalar_lea.sflag [#allocation9], %s311
        %s313 = sand.u32 %s128, 1
        %s314 = smul.addr %s313, 256
        %s315 = scalar_lea.vmem [#allocation10], %s314
        // Predicated region
        $region57: #{tpu_custom_call.1} parent=39 // pred_check
          %p316 = pneg %p141
        $region58: #{tpu_custom_call.1} parent=39 // pred_check_branch
          %318 = sbr.rel (%p316) target = $region60
        $region59: #{tpu_custom_call.1} parent=39 // pred_region
          %319 = dma.done %s312, 4096
        $region60: #{tpu_custom_call.1} parent=39 // pred_fallthru
          _
        %s320 = sand.u32 %s34, 1
        %s321 = scalar_lea.sflag [#allocation3], %s320
        %s322 = sand.u32 %s34, 1
        %s323 = smul.addr %s322, 256
        %s324 = scalar_lea.vmem [#allocation2], %s323
        %p325 = pneg %p47
        %p326 = pneg %p44
        %p327 = pneg %p68
        %p328 = pneg %p65
        %p329 = pneg %p89
        %p330 = pneg %p86
        %s331 = sand.u32 %s26, 1
        %s332 = scalar_lea.sflag [#allocation9], %s331
        %s333 = sand.u32 %s102, 1
        %s334 = smul.addr %s333, 256
        %s335 = scalar_lea.vmem [#allocation8], %s334
        %p336 = pneg %p115
        %p337 = pneg %p112
        %s338 = sand.u32 %s26, 1
        %s339 = scalar_lea.sflag [#allocation9], %s338
        %s340 = sand.u32 %s128, 1
        %s341 = smul.addr %s340, 256
        %s342 = scalar_lea.vmem [#allocation10], %s341
        %p343 = pneg %p141
        %p344 = pneg %p138
        %p345 = pneg %p167
        %p346 = pneg %p164
        %s347 = sand.u32 %s154, 1
        %s348 = scalar_lea.sflag [#allocation4], %s347
        %s349 = sand.u32 %s154, 1
        %s350 = smul.addr %s349, 256
        %s351 = scalar_lea.vmem [#allocation11], %s350
        %s352 = smul.u32 16, %s26
        %s353 = smul.u32 16, %s26
        %s354 = smul.u32 16, %s26
        %s355 = smul.u32 16, %s26
        %v356 = vld [vmem:[%s289] sm:$0xff]
        %v357 = vld [vmem:[%s289 + $0x8] sm:$0xff]
        %v358 = vld [vmem:[%s289 + $0x10] sm:$0xff]
        %v359 = vld [vmem:[%s289 + $0x18] sm:$0xff]
        %v360 = vld [vmem:[%s289 + $0x20] sm:$0xff]
        %v361 = vld [vmem:[%s289 + $0x28] sm:$0xff]
        %v362 = vld [vmem:[%s289 + $0x30] sm:$0xff]
        %v363 = vld [vmem:[%s289 + $0x38] sm:$0xff]
        %v364 = vld [vmem:[%s289 + $0x40] sm:$0xff]
        %v365 = vld [vmem:[%s289 + $0x48] sm:$0xff]
        %v366 = vld [vmem:[%s289 + $0x50] sm:$0xff]
        %v367 = vld [vmem:[%s289 + $0x58] sm:$0xff]
        %v368 = vld [vmem:[%s289 + $0x60] sm:$0xff]
        %v369 = vld [vmem:[%s289 + $0x68] sm:$0xff]
        %v370 = vld [vmem:[%s289 + $0x70] sm:$0xff]
        %v371 = vld [vmem:[%s289 + $0x78] sm:$0xff]
        %v372 = vld [vmem:[%s289 + $0x80] sm:$0xff]
        %v373 = vld [vmem:[%s289 + $0x88] sm:$0xff]
        %v374 = vld [vmem:[%s289 + $0x90] sm:$0xff]
        %v375 = vld [vmem:[%s289 + $0x98] sm:$0xff]
        %v376 = vld [vmem:[%s289 + $0xa0] sm:$0xff]
        %v377 = vld [vmem:[%s289 + $0xa8] sm:$0xff]
        %v378 = vld [vmem:[%s289 + $0xb0] sm:$0xff]
        %v379 = vld [vmem:[%s289 + $0xb8] sm:$0xff]
        %v380 = vld [vmem:[%s289 + $0xc0] sm:$0xff]
        %v381 = vld [vmem:[%s289 + $0xc8] sm:$0xff]
        %v382 = vld [vmem:[%s289 + $0xd0] sm:$0xff]
        %v383 = vld [vmem:[%s289 + $0xd8] sm:$0xff]
        %v384 = vld [vmem:[%s289 + $0xe0] sm:$0xff]
        %v385 = vld [vmem:[%s289 + $0xe8] sm:$0xff]
        %v386 = vld [vmem:[%s289 + $0xf0] sm:$0xff]
        %v387 = vld [vmem:[%s289 + $0xf8] sm:$0xff]
        %v388 = vmul.f32 %v356, 0.0625
        %v389 = vmul.f32 %v357, 0.0625
        %v390 = vmul.f32 %v358, 0.0625
        %v391 = vmul.f32 %v359, 0.0625
        %v392 = vmul.f32 %v360, 0.0625
        %v393 = vmul.f32 %v361, 0.0625
        %v394 = vmul.f32 %v362, 0.0625
        %v395 = vmul.f32 %v363, 0.0625
        %v396 = vmul.f32 %v364, 0.0625
        %v397 = vmul.f32 %v365, 0.0625
        %v398 = vmul.f32 %v366, 0.0625
        %v399 = vmul.f32 %v367, 0.0625
        %v400 = vmul.f32 %v368, 0.0625
        %v401 = vmul.f32 %v369, 0.0625
        %v402 = vmul.f32 %v370, 0.0625
        %v403 = vmul.f32 %v371, 0.0625
        %v404 = vmul.f32 %v372, 0.0625
        %v405 = vmul.f32 %v373, 0.0625
        %v406 = vmul.f32 %v374, 0.0625
        %v407 = vmul.f32 %v375, 0.0625
        %v408 = vmul.f32 %v376, 0.0625
        %v409 = vmul.f32 %v377, 0.0625
        %v410 = vmul.f32 %v378, 0.0625
        %v411 = vmul.f32 %v379, 0.0625
        %v412 = vmul.f32 %v380, 0.0625
        %v413 = vmul.f32 %v381, 0.0625
        %v414 = vmul.f32 %v382, 0.0625
        %v415 = vmul.f32 %v383, 0.0625
        %v416 = vmul.f32 %v384, 0.0625
        %v417 = vmul.f32 %v385, 0.0625
        %v418 = vmul.f32 %v386, 0.0625
        %v419 = vmul.f32 %v387, 0.0625
        %v420 = vpack.c.bf16 %v390, %v388
        %v421 = vpack.c.bf16 %v391, %v389
        %v422 = vpack.c.bf16 %v394, %v392
        %v423 = vpack.c.bf16 %v395, %v393
        %v424 = vpack.c.bf16 %v398, %v396
        %v425 = vpack.c.bf16 %v399, %v397
        %v426 = vpack.c.bf16 %v402, %v400
        %v427 = vpack.c.bf16 %v403, %v401
        %v428 = vpack.c.bf16 %v406, %v404
        %v429 = vpack.c.bf16 %v407, %v405
        %v430 = vpack.c.bf16 %v410, %v408
        %v431 = vpack.c.bf16 %v411, %v409
        %v432 = vpack.c.bf16 %v414, %v412
        %v433 = vpack.c.bf16 %v415, %v413
        %v434 = vpack.c.bf16 %v418, %v416
        %v435 = vpack.c.bf16 %v419, %v417
        %v436 = vld [vmem:[#allocation5] sm:$0xff]
        %v437 = vld [vmem:[#allocation5 + $0x8] sm:$0xff]
        %v438 = vld [vmem:[#allocation5 + $0x10] sm:$0xff]
        %v439 = vld [vmem:[#allocation5 + $0x18] sm:$0xff]
        %v440 = vld [vmem:[#allocation5 + $0x20] sm:$0xff]
        %v441 = vld [vmem:[#allocation5 + $0x28] sm:$0xff]
        %v442 = vld [vmem:[#allocation5 + $0x30] sm:$0xff]
        %v443 = vld [vmem:[#allocation5 + $0x38] sm:$0xff]
        %v444 = vld [vmem:[#allocation5 + $0x40] sm:$0xff]
        %v445 = vld [vmem:[#allocation5 + $0x48] sm:$0xff]
        %v446 = vld [vmem:[#allocation5 + $0x50] sm:$0xff]
        %v447 = vld [vmem:[#allocation5 + $0x58] sm:$0xff]
        %v448 = vld [vmem:[#allocation5 + $0x60] sm:$0xff]
        %v449 = vld [vmem:[#allocation5 + $0x68] sm:$0xff]
        %v450 = vld [vmem:[#allocation5 + $0x70] sm:$0xff]
        %v451 = vld [vmem:[#allocation5 + $0x78] sm:$0xff]
        %v452 = vld [vmem:[#allocation5 + $0x80] sm:$0xff]
        %v453 = vld [vmem:[#allocation5 + $0x88] sm:$0xff]
        %v454 = vld [vmem:[#allocation5 + $0x90] sm:$0xff]
        %v455 = vld [vmem:[#allocation5 + $0x98] sm:$0xff]
        %v456 = vld [vmem:[#allocation5 + $0xa0] sm:$0xff]
        %v457 = vld [vmem:[#allocation5 + $0xa8] sm:$0xff]
        %v458 = vld [vmem:[#allocation5 + $0xb0] sm:$0xff]
        %v459 = vld [vmem:[#allocation5 + $0xb8] sm:$0xff]
        %v460 = vld [vmem:[#allocation5 + $0xc0] sm:$0xff]
        %v461 = vld [vmem:[#allocation5 + $0xc8] sm:$0xff]
        %v462 = vld [vmem:[#allocation5 + $0xd0] sm:$0xff]
        %v463 = vld [vmem:[#allocation5 + $0xd8] sm:$0xff]
        %v464 = vld [vmem:[#allocation5 + $0xe0] sm:$0xff]
        %v465 = vld [vmem:[#allocation5 + $0xe8] sm:$0xff]
        %v466 = vld [vmem:[#allocation5 + $0xf0] sm:$0xff]
        %v467 = vld [vmem:[#allocation5 + $0xf8] sm:$0xff]
        %v468 = vld [vmem:[#allocation5 + $0x100] sm:$0xff]
        %v469 = vld [vmem:[#allocation5 + $0x108] sm:$0xff]
        %v470 = vld [vmem:[#allocation5 + $0x110] sm:$0xff]
        %v471 = vld [vmem:[#allocation5 + $0x118] sm:$0xff]
        %v472 = vld [vmem:[#allocation5 + $0x120] sm:$0xff]
        %v473 = vld [vmem:[#allocation5 + $0x128] sm:$0xff]
        %v474 = vld [vmem:[#allocation5 + $0x130] sm:$0xff]
        %v475 = vld [vmem:[#allocation5 + $0x138] sm:$0xff]
        %v476 = vld [vmem:[#allocation5 + $0x140] sm:$0xff]
        %v477 = vld [vmem:[#allocation5 + $0x148] sm:$0xff]
        %v478 = vld [vmem:[#allocation5 + $0x150] sm:$0xff]
        %v479 = vld [vmem:[#allocation5 + $0x158] sm:$0xff]
        %v480 = vld [vmem:[#allocation5 + $0x160] sm:$0xff]
        %v481 = vld [vmem:[#allocation5 + $0x168] sm:$0xff]
        %v482 = vld [vmem:[#allocation5 + $0x170] sm:$0xff]
        %v483 = vld [vmem:[#allocation5 + $0x178] sm:$0xff]
        %v484 = vld [vmem:[#allocation5 + $0x180] sm:$0xff]
        %v485 = vld [vmem:[#allocation5 + $0x188] sm:$0xff]
        %v486 = vld [vmem:[#allocation5 + $0x190] sm:$0xff]
        %v487 = vld [vmem:[#allocation5 + $0x198] sm:$0xff]
        %v488 = vld [vmem:[#allocation5 + $0x1a0] sm:$0xff]
        %v489 = vld [vmem:[#allocation5 + $0x1a8] sm:$0xff]
        %v490 = vld [vmem:[#allocation5 + $0x1b0] sm:$0xff]
        %v491 = vld [vmem:[#allocation5 + $0x1b8] sm:$0xff]
        %v492 = vld [vmem:[#allocation5 + $0x1c0] sm:$0xff]
        %v493 = vld [vmem:[#allocation5 + $0x1c8] sm:$0xff]
        %v494 = vld [vmem:[#allocation5 + $0x1d0] sm:$0xff]
        %v495 = vld [vmem:[#allocation5 + $0x1d8] sm:$0xff]
        %v496 = vld [vmem:[#allocation5 + $0x1e0] sm:$0xff]
        %v497 = vld [vmem:[#allocation5 + $0x1e8] sm:$0xff]
        %v498 = vld [vmem:[#allocation5 + $0x1f0] sm:$0xff]
        %v499 = vld [vmem:[#allocation5 + $0x1f8] sm:$0xff]
        %v500 = vpack.c.bf16 %v438, %v436
        %v501 = vpack.c.bf16 %v439, %v437
        %v502 = vpack.c.bf16 %v442, %v440
        %v503 = vpack.c.bf16 %v443, %v441
        %v504 = vpack.c.bf16 %v446, %v444
        %v505 = vpack.c.bf16 %v447, %v445
        %v506 = vpack.c.bf16 %v450, %v448
        %v507 = vpack.c.bf16 %v451, %v449
        %v508 = vpack.c.bf16 %v454, %v452
        %v509 = vpack.c.bf16 %v455, %v453
        %v510 = vpack.c.bf16 %v458, %v456
        %v511 = vpack.c.bf16 %v459, %v457
        %v512 = vpack.c.bf16 %v462, %v460
        %v513 = vpack.c.bf16 %v463, %v461
        %v514 = vpack.c.bf16 %v466, %v464
        %v515 = vpack.c.bf16 %v467, %v465
        %v516 = vpack.c.bf16 %v470, %v468
        %v517 = vpack.c.bf16 %v471, %v469
        %v518 = vpack.c.bf16 %v474, %v472
        %v519 = vpack.c.bf16 %v475, %v473
        %v520 = vpack.c.bf16 %v478, %v476
        %v521 = vpack.c.bf16 %v479, %v477
        %v522 = vpack.c.bf16 %v482, %v480
        %v523 = vpack.c.bf16 %v483, %v481
        %v524 = vpack.c.bf16 %v486, %v484
        %v525 = vpack.c.bf16 %v487, %v485
        %v526 = vpack.c.bf16 %v490, %v488
        %v527 = vpack.c.bf16 %v491, %v489
        %v528 = vpack.c.bf16 %v494, %v492
        %v529 = vpack.c.bf16 %v495, %v493
        %v530 = vpack.c.bf16 %v498, %v496
        %v531 = vpack.c.bf16 %v499, %v497
        %v532 = vld [vmem:[%s306] sm:$0xff]
        %v533 = vld [vmem:[%s306 + $0x8] sm:$0xff]
        %v534 = vld [vmem:[%s306 + $0x10] sm:$0xff]
        %v535 = vld [vmem:[%s306 + $0x18] sm:$0xff]
        %v536 = vld [vmem:[%s306 + $0x20] sm:$0xff]
        %v537 = vld [vmem:[%s306 + $0x28] sm:$0xff]
        %v538 = vld [vmem:[%s306 + $0x30] sm:$0xff]
        %v539 = vld [vmem:[%s306 + $0x38] sm:$0xff]
        %v540 = vld [vmem:[%s306 + $0x40] sm:$0xff]
        %v541 = vld [vmem:[%s306 + $0x48] sm:$0xff]
        %v542 = vld [vmem:[%s306 + $0x50] sm:$0xff]
        %v543 = vld [vmem:[%s306 + $0x58] sm:$0xff]
        %v544 = vld [vmem:[%s306 + $0x60] sm:$0xff]
        %v545 = vld [vmem:[%s306 + $0x68] sm:$0xff]
        %v546 = vld [vmem:[%s306 + $0x70] sm:$0xff]
        %v547 = vld [vmem:[%s306 + $0x78] sm:$0xff]
        %v548 = vld [vmem:[%s306 + $0x80] sm:$0xff]
        %v549 = vld [vmem:[%s306 + $0x88] sm:$0xff]
        %v550 = vld [vmem:[%s306 + $0x90] sm:$0xff]
        %v551 = vld [vmem:[%s306 + $0x98] sm:$0xff]
        %v552 = vld [vmem:[%s306 + $0xa0] sm:$0xff]
        %v553 = vld [vmem:[%s306 + $0xa8] sm:$0xff]
        %v554 = vld [vmem:[%s306 + $0xb0] sm:$0xff]
        %v555 = vld [vmem:[%s306 + $0xb8] sm:$0xff]
        %v556 = vld [vmem:[%s306 + $0xc0] sm:$0xff]
        %v557 = vld [vmem:[%s306 + $0xc8] sm:$0xff]
        %v558 = vld [vmem:[%s306 + $0xd0] sm:$0xff]
        %v559 = vld [vmem:[%s306 + $0xd8] sm:$0xff]
        %v560 = vld [vmem:[%s306 + $0xe0] sm:$0xff]
        %v561 = vld [vmem:[%s306 + $0xe8] sm:$0xff]
        %v562 = vld [vmem:[%s306 + $0xf0] sm:$0xff]
        %v563 = vld [vmem:[%s306 + $0xf8] sm:$0xff]
        %564 = vmatprep.subr.bf16.mxu0 %v501
        %565 = vmatpush1.bf16.xpose.msra.mxu0 %v500
        %566 = vmatprep.subr.bf16.mxu0 %v503
        %567 = vmatpush1.bf16.xpose.msra.mxu0 %v502
        %568 = vmatprep.subr.bf16.mxu0 %v505
        %569 = vmatpush1.bf16.xpose.msra.mxu0 %v504
        %570 = vmatprep.subr.bf16.mxu0 %v507
        %571 = vmatpush1.bf16.xpose.msra.mxu0 %v506
        %572 = vmatprep.subr.bf16.mxu0 %v509
        %573 = vmatpush1.bf16.xpose.msra.mxu0 %v508
        %574 = vmatprep.subr.bf16.mxu0 %v511
        %575 = vmatpush1.bf16.xpose.msra.mxu0 %v510
        %576 = vmatprep.subr.bf16.mxu0 %v513
        %577 = vmatpush1.bf16.xpose.msra.mxu0 %v512
        %578 = vmatprep.subr.bf16.mxu0 %v515
        %579 = vmatpush1.bf16.xpose.msra.mxu0 %v514
        %580 = vmatprep.subr.bf16.mxu0 %v517
        %581 = vmatpush1.bf16.xpose.msra.mxu0 %v516
        %582 = vmatprep.subr.bf16.mxu0 %v519
        %583 = vmatpush1.bf16.xpose.msra.mxu0 %v518
        %584 = vmatprep.subr.bf16.mxu0 %v521
        %585 = vmatpush1.bf16.xpose.msra.mxu0 %v520
        %586 = vmatprep.subr.bf16.mxu0 %v523
        %587 = vmatpush1.bf16.xpose.msra.mxu0 %v522
        %588 = vmatprep.subr.bf16.mxu0 %v525
        %589 = vmatpush1.bf16.xpose.msra.mxu0 %v524
        %590 = vmatprep.subr.bf16.mxu0 %v527
        %591 = vmatpush1.bf16.xpose.msra.mxu0 %v526
        %592 = vmatprep.subr.bf16.mxu0 %v529
        %593 = vmatpush1.bf16.xpose.msra.mxu0 %v528
        %594 = vmatprep.subr.bf16.mxu0 %v531
        %595 = vmatpush1.bf16.xpose.msra.mxu0 %v530
        %596 = vmatprep.mubr.bf16.mxu0 %v421
        %597 = vmatmul.mubr.bf16.gmra.mrb[0].mxu0 %v420
        %v598 = vpop.f32.mrb[0].mxu0
        %v599 = vadd.f32 %v532, %v598
        %v600 = vpop.f32.mrb[0].mxu0
        %v601 = vadd.f32 %v533, %v600
        %v602 = vpop.f32.mrb[0].mxu0
        %v603 = vadd.f32 %v534, %v602
        %v604 = vpop.f32.mrb[0].mxu0
        %v605 = vadd.f32 %v535, %v604
        %606 = vmatprep.mubr.bf16.mxu0 %v423
        %607 = vmatmul.mubr.bf16.gmra.mrb[0].mxu0 %v422
        %v608 = vpop.f32.mrb[0].mxu0
        %v609 = vadd.f32 %v536, %v608
        %v610 = vpop.f32.mrb[0].mxu0
        %v611 = vadd.f32 %v537, %v610
        %v612 = vpop.f32.mrb[0].mxu0
        %v613 = vadd.f32 %v538, %v612
        %v614 = vpop.f32.mrb[0].mxu0
        %v615 = vadd.f32 %v539, %v614
        %616 = vmatprep.mubr.bf16.mxu0 %v425
        %617 = vmatmul.mubr.bf16.gmra.mrb[0].mxu0 %v424
        %v618 = vpop.f32.mrb[0].mxu0
        %v619 = vadd.f32 %v540, %v618
        %v620 = vpop.f32.mrb[0].mxu0
        %v621 = vadd.f32 %v541, %v620
        %v622 = vpop.f32.mrb[0].mxu0
        %v623 = vadd.f32 %v542, %v622
        %v624 = vpop.f32.mrb[0].mxu0
        %v625 = vadd.f32 %v543, %v624
        %626 = vmatprep.mubr.bf16.mxu0 %v427
        %627 = vmatmul.mubr.bf16.gmra.mrb[0].mxu0 %v426
        %v628 = vpop.f32.mrb[0].mxu0
        %v629 = vadd.f32 %v544, %v628
        %v630 = vpop.f32.mrb[0].mxu0
        %v631 = vadd.f32 %v545, %v630
        %v632 = vpop.f32.mrb[0].mxu0
        %v633 = vadd.f32 %v546, %v632
        %v634 = vpop.f32.mrb[0].mxu0
        %v635 = vadd.f32 %v547, %v634
        %636 = vmatprep.mubr.bf16.mxu0 %v429
        %637 = vmatmul.mubr.bf16.gmra.mrb[0].mxu0 %v428
        %v638 = vpop.f32.mrb[0].mxu0
        %v639 = vadd.f32 %v548, %v638
        %v640 = vpop.f32.mrb[0].mxu0
        %v641 = vadd.f32 %v549, %v640
        %v642 = vpop.f32.mrb[0].mxu0
        %v643 = vadd.f32 %v550, %v642
        %v644 = vpop.f32.mrb[0].mxu0
        %v645 = vadd.f32 %v551, %v644
        %646 = vmatprep.mubr.bf16.mxu0 %v431
        %647 = vmatmul.mubr.bf16.gmra.mrb[0].mxu0 %v430
        %v648 = vpop.f32.mrb[0].mxu0
        %v649 = vadd.f32 %v552, %v648
        %v650 = vpop.f32.mrb[0].mxu0
        %v651 = vadd.f32 %v553, %v650
        %v652 = vpop.f32.mrb[0].mxu0
        %v653 = vadd.f32 %v554, %v652
        %v654 = vpop.f32.mrb[0].mxu0
        %v655 = vadd.f32 %v555, %v654
        %656 = vmatprep.mubr.bf16.mxu0 %v433
        %657 = vmatmul.mubr.bf16.gmra.mrb[0].mxu0 %v432
        %v658 = vpop.f32.mrb[0].mxu0
        %v659 = vadd.f32 %v556, %v658
        %v660 = vpop.f32.mrb[0].mxu0
        %v661 = vadd.f32 %v557, %v660
        %v662 = vpop.f32.mrb[0].mxu0
        %v663 = vadd.f32 %v558, %v662
        %v664 = vpop.f32.mrb[0].mxu0
        %v665 = vadd.f32 %v559, %v664
        %666 = vmatprep.mubr.bf16.mxu0 %v435
        %667 = vmatmul.mubr.bf16.gmra.mrb[0].mxu0 %v434
        %v668 = vpop.f32.mrb[0].mxu0
        %v669 = vadd.f32 %v560, %v668
        %v670 = vpop.f32.mrb[0].mxu0
        %v671 = vadd.f32 %v561, %v670
        %v672 = vpop.f32.mrb[0].mxu0
        %v673 = vadd.f32 %v562, %v672
        %v674 = vpop.f32.mrb[0].mxu0
        %v675 = vadd.f32 %v563, %v674
        %676 = vdwg.mxu0
        %v677 = vmax.f32 %v599, %v601
        %678 = vmax.xlane.f32.xlu0 %v677
        %v679 = vpop.xlane.xlu0 %678
        %v680 = vmax.f32 %v603, %v605
        %681 = vmax.xlane.f32.xlu0 %v680
        %v682 = vpop.xlane.xlu0 %681
        %v683 = vmax.f32 %v609, %v611
        %684 = vmax.xlane.f32.xlu0 %v683
        %v685 = vpop.xlane.xlu0 %684
        %v686 = vmax.f32 %v613, %v615
        %687 = vmax.xlane.f32.xlu0 %v686
        %v688 = vpop.xlane.xlu0 %687
        %v689 = vmax.f32 %v619, %v621
        %690 = vmax.xlane.f32.xlu0 %v689
        %v691 = vpop.xlane.xlu0 %690
        %v692 = vmax.f32 %v623, %v625
        %693 = vmax.xlane.f32.xlu0 %v692
        %v694 = vpop.xlane.xlu0 %693
        %v695 = vmax.f32 %v629, %v631
        %696 = vmax.xlane.f32.xlu0 %v695
        %v697 = vpop.xlane.xlu0 %696
        %v698 = vmax.f32 %v633, %v635
        %699 = vmax.xlane.f32.xlu0 %v698
        %v700 = vpop.xlane.xlu0 %699
        %v701 = vmax.f32 %v639, %v641
        %702 = vmax.xlane.f32.xlu0 %v701
        %v703 = vpop.xlane.xlu0 %702
        %v704 = vmax.f32 %v643, %v645
        %705 = vmax.xlane.f32.xlu0 %v704
        %v706 = vpop.xlane.xlu0 %705
        %v707 = vmax.f32 %v649, %v651
        %708 = vmax.xlane.f32.xlu0 %v707
        %v709 = vpop.xlane.xlu0 %708
        %v710 = vmax.f32 %v653, %v655
        %711 = vmax.xlane.f32.xlu0 %v710
        %v712 = vpop.xlane.xlu0 %711
        %v713 = vmax.f32 %v659, %v661
        %714 = vmax.xlane.f32.xlu0 %v713
        %v715 = vpop.xlane.xlu0 %714
        %v716 = vmax.f32 %v663, %v665
        %717 = vmax.xlane.f32.xlu0 %v716
        %v718 = vpop.xlane.xlu0 %717
        %v719 = vmax.f32 %v669, %v671
        %720 = vmax.xlane.f32.xlu0 %v719
        %v721 = vpop.xlane.xlu0 %720
        %v722 = vmax.f32 %v673, %v675
        %723 = vmax.xlane.f32.xlu0 %v722
        %v724 = vpop.xlane.xlu0 %723
        %v725 = vsub.f32 %v599, %v679
        %v726 = vsub.f32 %v601, %v679
        %v727 = vsub.f32 %v603, %v682
        %v728 = vsub.f32 %v605, %v682
        %v729 = vsub.f32 %v609, %v685
        %v730 = vsub.f32 %v611, %v685
        %v731 = vsub.f32 %v613, %v688
        %v732 = vsub.f32 %v615, %v688
        %v733 = vsub.f32 %v619, %v691
        %v734 = vsub.f32 %v621, %v691
        %v735 = vsub.f32 %v623, %v694
        %v736 = vsub.f32 %v625, %v694
        %v737 = vsub.f32 %v629, %v697
        %v738 = vsub.f32 %v631, %v697
        %v739 = vsub.f32 %v633, %v700
        %v740 = vsub.f32 %v635, %v700
        %v741 = vsub.f32 %v639, %v703
        %v742 = vsub.f32 %v641, %v703
        %v743 = vsub.f32 %v643, %v706
        %v744 = vsub.f32 %v645, %v706
        %v745 = vsub.f32 %v649, %v709
        %v746 = vsub.f32 %v651, %v709
        %v747 = vsub.f32 %v653, %v712
        %v748 = vsub.f32 %v655, %v712
        %v749 = vsub.f32 %v659, %v715
        %v750 = vsub.f32 %v661, %v715
        %v751 = vsub.f32 %v663, %v718
        %v752 = vsub.f32 %v665, %v718
        %v753 = vsub.f32 %v669, %v721
        %v754 = vsub.f32 %v671, %v721
        %v755 = vsub.f32 %v673, %v724
        %v756 = vsub.f32 %v675, %v724
        %v757 = vmul.f32 %v725, 1.442695
        %v758 = vpow.pop %v757
        %v759 = vmul.f32 %v726, 1.442695
        %v760 = vpow.pop %v759
        %v761 = vmul.f32 %v727, 1.442695
        %v762 = vpow.pop %v761
        %v763 = vmul.f32 %v728, 1.442695
        %v764 = vpow.pop %v763
        %v765 = vmul.f32 %v729, 1.442695
        %v766 = vpow.pop %v765
        %v767 = vmul.f32 %v730, 1.442695
        %v768 = vpow.pop %v767
        %v769 = vmul.f32 %v731, 1.442695
        %v770 = vpow.pop %v769
        %v771 = vmul.f32 %v732, 1.442695
        %v772 = vpow.pop %v771
        %v773 = vmul.f32 %v733, 1.442695
        %v774 = vpow.pop %v773
        %v775 = vmul.f32 %v734, 1.442695
        %v776 = vpow.pop %v775
        %v777 = vmul.f32 %v735, 1.442695
        %v778 = vpow.pop %v777
        %v779 = vmul.f32 %v736, 1.442695
        %v780 = vpow.pop %v779
        %v781 = vmul.f32 %v737, 1.442695
        %v782 = vpow.pop %v781
        %v783 = vmul.f32 %v738, 1.442695
        %v784 = vpow.pop %v783
        %v785 = vmul.f32 %v739, 1.442695
        %v786 = vpow.pop %v785
        %v787 = vmul.f32 %v740, 1.442695
        %v788 = vpow.pop %v787
        %v789 = vmul.f32 %v741, 1.442695
        %v790 = vpow.pop %v789
        %v791 = vmul.f32 %v742, 1.442695
        %v792 = vpow.pop %v791
        %v793 = vmul.f32 %v743, 1.442695
        %v794 = vpow.pop %v793
        %v795 = vmul.f32 %v744, 1.442695
        %v796 = vpow.pop %v795
        %v797 = vmul.f32 %v745, 1.442695
        %v798 = vpow.pop %v797
        %v799 = vmul.f32 %v746, 1.442695
        %v800 = vpow.pop %v799
        %v801 = vmul.f32 %v747, 1.442695
        %v802 = vpow.pop %v801
        %v803 = vmul.f32 %v748, 1.442695
        %v804 = vpow.pop %v803
        %v805 = vmul.f32 %v749, 1.442695
        %v806 = vpow.pop %v805
        %v807 = vmul.f32 %v750, 1.442695
        %v808 = vpow.pop %v807
        %v809 = vmul.f32 %v751, 1.442695
        %v810 = vpow.pop %v809
        %v811 = vmul.f32 %v752, 1.442695
        %v812 = vpow.pop %v811
        %v813 = vmul.f32 %v753, 1.442695
        %v814 = vpow.pop %v813
        %v815 = vmul.f32 %v754, 1.442695
        %v816 = vpow.pop %v815
        %v817 = vmul.f32 %v755, 1.442695
        %v818 = vpow.pop %v817
        %v819 = vmul.f32 %v756, 1.442695
        %v820 = vpow.pop %v819
        %v821 = vadd.f32 %v758, %v760
        %822 = vadd.xlane.f32.xlu0 %v821
        %v823 = vpop.xlane.xlu0 %822
        %v824 = vadd.f32 %v762, %v764
        %825 = vadd.xlane.f32.xlu0 %v824
        %v826 = vpop.xlane.xlu0 %825
        %v827 = vadd.f32 %v766, %v768
        %828 = vadd.xlane.f32.xlu0 %v827
        %v829 = vpop.xlane.xlu0 %828
        %v830 = vadd.f32 %v770, %v772
        %831 = vadd.xlane.f32.xlu0 %v830
        %v832 = vpop.xlane.xlu0 %831
        %v833 = vadd.f32 %v774, %v776
        %834 = vadd.xlane.f32.xlu0 %v833
        %v835 = vpop.xlane.xlu0 %834
        %v836 = vadd.f32 %v778, %v780
        %837 = vadd.xlane.f32.xlu0 %v836
        %v838 = vpop.xlane.xlu0 %837
        %v839 = vadd.f32 %v782, %v784
        %840 = vadd.xlane.f32.xlu0 %v839
        %v841 = vpop.xlane.xlu0 %840
        %v842 = vadd.f32 %v786, %v788
        %843 = vadd.xlane.f32.xlu0 %v842
        %v844 = vpop.xlane.xlu0 %843
        %v845 = vadd.f32 %v790, %v792
        %846 = vadd.xlane.f32.xlu0 %v845
        %v847 = vpop.xlane.xlu0 %846
        %v848 = vadd.f32 %v794, %v796
        %849 = vadd.xlane.f32.xlu0 %v848
        %v850 = vpop.xlane.xlu0 %849
        %v851 = vadd.f32 %v798, %v800
        %852 = vadd.xlane.f32.xlu0 %v851
        %v853 = vpop.xlane.xlu0 %852
        %v854 = vadd.f32 %v802, %v804
        %855 = vadd.xlane.f32.xlu0 %v854
        %v856 = vpop.xlane.xlu0 %855
        %v857 = vadd.f32 %v806, %v808
        %858 = vadd.xlane.f32.xlu0 %v857
        %v859 = vpop.xlane.xlu0 %858
        %v860 = vadd.f32 %v810, %v812
        %861 = vadd.xlane.f32.xlu0 %v860
        %v862 = vpop.xlane.xlu0 %861
        %v863 = vadd.f32 %v814, %v816
        %864 = vadd.xlane.f32.xlu0 %v863
        %v865 = vpop.xlane.xlu0 %864
        %v866 = vadd.f32 %v818, %v820
        %867 = vadd.xlane.f32.xlu0 %v866
        %v868 = vpop.xlane.xlu0 %867
        %v869 = vld [vmem:[%s315] sm:$0xff]
        %v870 = vld [vmem:[%s315 + $0x8] sm:$0xff]
        %v871 = vld [vmem:[%s315 + $0x10] sm:$0xff]
        %v872 = vld [vmem:[%s315 + $0x18] sm:$0xff]
        %v873 = vld [vmem:[%s315 + $0x20] sm:$0xff]
        %v874 = vld [vmem:[%s315 + $0x28] sm:$0xff]
        %v875 = vld [vmem:[%s315 + $0x30] sm:$0xff]
        %v876 = vld [vmem:[%s315 + $0x38] sm:$0xff]
        %v877 = vld [vmem:[%s315 + $0x40] sm:$0xff]
        %v878 = vld [vmem:[%s315 + $0x48] sm:$0xff]
        %v879 = vld [vmem:[%s315 + $0x50] sm:$0xff]
        %v880 = vld [vmem:[%s315 + $0x58] sm:$0xff]
        %v881 = vld [vmem:[%s315 + $0x60] sm:$0xff]
        %v882 = vld [vmem:[%s315 + $0x68] sm:$0xff]
        %v883 = vld [vmem:[%s315 + $0x70] sm:$0xff]
        %v884 = vld [vmem:[%s315 + $0x78] sm:$0xff]
        %v885 = vld [vmem:[%s315 + $0x80] sm:$0xff]
        %v886 = vld [vmem:[%s315 + $0x88] sm:$0xff]
        %v887 = vld [vmem:[%s315 + $0x90] sm:$0xff]
        %v888 = vld [vmem:[%s315 + $0x98] sm:$0xff]
        %v889 = vld [vmem:[%s315 + $0xa0] sm:$0xff]
        %v890 = vld [vmem:[%s315 + $0xa8] sm:$0xff]
        %v891 = vld [vmem:[%s315 + $0xb0] sm:$0xff]
        %v892 = vld [vmem:[%s315 + $0xb8] sm:$0xff]
        %v893 = vld [vmem:[%s315 + $0xc0] sm:$0xff]
        %v894 = vld [vmem:[%s315 + $0xc8] sm:$0xff]
        %v895 = vld [vmem:[%s315 + $0xd0] sm:$0xff]
        %v896 = vld [vmem:[%s315 + $0xd8] sm:$0xff]
        %v897 = vld [vmem:[%s315 + $0xe0] sm:$0xff]
        %v898 = vld [vmem:[%s315 + $0xe8] sm:$0xff]
        %v899 = vld [vmem:[%s315 + $0xf0] sm:$0xff]
        %v900 = vld [vmem:[%s315 + $0xf8] sm:$0xff]
        %v901 = vmul.f32 %v758, %v869
        %v902 = vmul.f32 %v760, %v870
        %v903 = vmul.f32 %v762, %v871
        %v904 = vmul.f32 %v764, %v872
        %v905 = vmul.f32 %v766, %v873
        %v906 = vmul.f32 %v768, %v874
        %v907 = vmul.f32 %v770, %v875
        %v908 = vmul.f32 %v772, %v876
        %v909 = vmul.f32 %v774, %v877
        %v910 = vmul.f32 %v776, %v878
        %v911 = vmul.f32 %v778, %v879
        %v912 = vmul.f32 %v780, %v880
        %v913 = vmul.f32 %v782, %v881
        %v914 = vmul.f32 %v784, %v882
        %v915 = vmul.f32 %v786, %v883
        %v916 = vmul.f32 %v788, %v884
        %v917 = vmul.f32 %v790, %v885
        %v918 = vmul.f32 %v792, %v886
        %v919 = vmul.f32 %v794, %v887
        %v920 = vmul.f32 %v796, %v888
        %v921 = vmul.f32 %v798, %v889
        %v922 = vmul.f32 %v800, %v890
        %v923 = vmul.f32 %v802, %v891
        %v924 = vmul.f32 %v804, %v892
        %v925 = vmul.f32 %v806, %v893
        %v926 = vmul.f32 %v808, %v894
        %v927 = vmul.f32 %v810, %v895
        %v928 = vmul.f32 %v812, %v896
        %v929 = vmul.f32 %v814, %v897
        %v930 = vmul.f32 %v816, %v898
        %v931 = vmul.f32 %v818, %v899
        %v932 = vmul.f32 %v820, %v900
        %v933 = vpack.c.bf16 %v903, %v901
        %v934 = vpack.c.bf16 %v904, %v902
        %v935 = vpack.c.bf16 %v907, %v905
        %v936 = vpack.c.bf16 %v908, %v906
        %v937 = vpack.c.bf16 %v911, %v909
        %v938 = vpack.c.bf16 %v912, %v910
        %v939 = vpack.c.bf16 %v915, %v913
        %v940 = vpack.c.bf16 %v916, %v914
        %v941 = vpack.c.bf16 %v919, %v917
        %v942 = vpack.c.bf16 %v920, %v918
        %v943 = vpack.c.bf16 %v923, %v921
        %v944 = vpack.c.bf16 %v924, %v922
        %v945 = vpack.c.bf16 %v927, %v925
        %v946 = vpack.c.bf16 %v928, %v926
        %v947 = vpack.c.bf16 %v931, %v929
        %v948 = vpack.c.bf16 %v932, %v930
        %v949 = vld [vmem:[#allocation7] sm:$0xff]
        %v950 = vld [vmem:[#allocation7 + $0x8] sm:$0xff]
        %v951 = vld [vmem:[#allocation7 + $0x10] sm:$0xff]
        %v952 = vld [vmem:[#allocation7 + $0x18] sm:$0xff]
        %v953 = vld [vmem:[#allocation7 + $0x20] sm:$0xff]
        %v954 = vld [vmem:[#allocation7 + $0x28] sm:$0xff]
        %v955 = vld [vmem:[#allocation7 + $0x30] sm:$0xff]
        %v956 = vld [vmem:[#allocation7 + $0x38] sm:$0xff]
        %v957 = vld [vmem:[#allocation7 + $0x40] sm:$0xff]
        %v958 = vld [vmem:[#allocation7 + $0x48] sm:$0xff]
        %v959 = vld [vmem:[#allocation7 + $0x50] sm:$0xff]
        %v960 = vld [vmem:[#allocation7 + $0x58] sm:$0xff]
        %v961 = vld [vmem:[#allocation7 + $0x60] sm:$0xff]
        %v962 = vld [vmem:[#allocation7 + $0x68] sm:$0xff]
        %v963 = vld [vmem:[#allocation7 + $0x70] sm:$0xff]
        %v964 = vld [vmem:[#allocation7 + $0x78] sm:$0xff]
        %v965 = vld [vmem:[#allocation7 + $0x80] sm:$0xff]
        %v966 = vld [vmem:[#allocation7 + $0x88] sm:$0xff]
        %v967 = vld [vmem:[#allocation7 + $0x90] sm:$0xff]
        %v968 = vld [vmem:[#allocation7 + $0x98] sm:$0xff]
        %v969 = vld [vmem:[#allocation7 + $0xa0] sm:$0xff]
        %v970 = vld [vmem:[#allocation7 + $0xa8] sm:$0xff]
        %v971 = vld [vmem:[#allocation7 + $0xb0] sm:$0xff]
        %v972 = vld [vmem:[#allocation7 + $0xb8] sm:$0xff]
        %v973 = vld [vmem:[#allocation7 + $0xc0] sm:$0xff]
        %v974 = vld [vmem:[#allocation7 + $0xc8] sm:$0xff]
        %v975 = vld [vmem:[#allocation7 + $0xd0] sm:$0xff]
        %v976 = vld [vmem:[#allocation7 + $0xd8] sm:$0xff]
        %v977 = vld [vmem:[#allocation7 + $0xe0] sm:$0xff]
        %v978 = vld [vmem:[#allocation7 + $0xe8] sm:$0xff]
        %v979 = vld [vmem:[#allocation7 + $0xf0] sm:$0xff]
        %v980 = vld [vmem:[#allocation7 + $0xf8] sm:$0xff]
        %v981 = vld [vmem:[#allocation7 + $0x100] sm:$0xff]
        %v982 = vld [vmem:[#allocation7 + $0x108] sm:$0xff]
        %v983 = vld [vmem:[#allocation7 + $0x110] sm:$0xff]
        %v984 = vld [vmem:[#allocation7 + $0x118] sm:$0xff]
        %v985 = vld [vmem:[#allocation7 + $0x120] sm:$0xff]
        %v986 = vld [vmem:[#allocation7 + $0x128] sm:$0xff]
        %v987 = vld [vmem:[#allocation7 + $0x130] sm:$0xff]
        %v988 = vld [vmem:[#allocation7 + $0x138] sm:$0xff]
        %v989 = vld [vmem:[#allocation7 + $0x140] sm:$0xff]
        %v990 = vld [vmem:[#allocation7 + $0x148] sm:$0xff]
        %v991 = vld [vmem:[#allocation7 + $0x150] sm:$0xff]
        %v992 = vld [vmem:[#allocation7 + $0x158] sm:$0xff]
        %v993 = vld [vmem:[#allocation7 + $0x160] sm:$0xff]
        %v994 = vld [vmem:[#allocation7 + $0x168] sm:$0xff]
        %v995 = vld [vmem:[#allocation7 + $0x170] sm:$0xff]
        %v996 = vld [vmem:[#allocation7 + $0x178] sm:$0xff]
        %v997 = vld [vmem:[#allocation7 + $0x180] sm:$0xff]
        %v998 = vld [vmem:[#allocation7 + $0x188] sm:$0xff]
        %v999 = vld [vmem:[#allocation7 + $0x190] sm:$0xff]
        %v1000 = vld [vmem:[#allocation7 + $0x198] sm:$0xff]
        %v1001 = vld [vmem:[#allocation7 + $0x1a0] sm:$0xff]
        %v1002 = vld [vmem:[#allocation7 + $0x1a8] sm:$0xff]
        %v1003 = vld [vmem:[#allocation7 + $0x1b0] sm:$0xff]
        %v1004 = vld [vmem:[#allocation7 + $0x1b8] sm:$0xff]
        %v1005 = vld [vmem:[#allocation7 + $0x1c0] sm:$0xff]
        %v1006 = vld [vmem:[#allocation7 + $0x1c8] sm:$0xff]
        %v1007 = vld [vmem:[#allocation7 + $0x1d0] sm:$0xff]
        %v1008 = vld [vmem:[#allocation7 + $0x1d8] sm:$0xff]
        %v1009 = vld [vmem:[#allocation7 + $0x1e0] sm:$0xff]
        %v1010 = vld [vmem:[#allocation7 + $0x1e8] sm:$0xff]
        %v1011 = vld [vmem:[#allocation7 + $0x1f0] sm:$0xff]
        %v1012 = vld [vmem:[#allocation7 + $0x1f8] sm:$0xff]
        %v1013 = vpack.c.bf16 %v951, %v949
        %v1014 = vpack.c.bf16 %v952, %v950
        %v1015 = vpack.c.bf16 %v955, %v953
        %v1016 = vpack.c.bf16 %v956, %v954
        %v1017 = vpack.c.bf16 %v959, %v957
        %v1018 = vpack.c.bf16 %v960, %v958
        %v1019 = vpack.c.bf16 %v963, %v961
        %v1020 = vpack.c.bf16 %v964, %v962
        %v1021 = vpack.c.bf16 %v967, %v965
        %v1022 = vpack.c.bf16 %v968, %v966
        %v1023 = vpack.c.bf16 %v971, %v969
        %v1024 = vpack.c.bf16 %v972, %v970
        %v1025 = vpack.c.bf16 %v975, %v973
        %v1026 = vpack.c.bf16 %v976, %v974
        %v1027 = vpack.c.bf16 %v979, %v977
        %v1028 = vpack.c.bf16 %v980, %v978
        %v1029 = vpack.c.bf16 %v983, %v981
        %v1030 = vpack.c.bf16 %v984, %v982
        %v1031 = vpack.c.bf16 %v987, %v985
        %v1032 = vpack.c.bf16 %v988, %v986
        %v1033 = vpack.c.bf16 %v991, %v989
        %v1034 = vpack.c.bf16 %v992, %v990
        %v1035 = vpack.c.bf16 %v995, %v993
        %v1036 = vpack.c.bf16 %v996, %v994
        %v1037 = vpack.c.bf16 %v999, %v997
        %v1038 = vpack.c.bf16 %v1000, %v998
        %v1039 = vpack.c.bf16 %v1003, %v1001
        %v1040 = vpack.c.bf16 %v1004, %v1002
        %v1041 = vpack.c.bf16 %v1007, %v1005
        %v1042 = vpack.c.bf16 %v1008, %v1006
        %v1043 = vpack.c.bf16 %v1011, %v1009
        %v1044 = vpack.c.bf16 %v1012, %v1010
        %1045 = vmatprep.subr.bf16.mxu0 %v1014
        %1046 = vmatpush1.bf16.msra.mxu0 %v1013
        %1047 = vmatprep.subr.bf16.mxu0 %v1016
        %1048 = vmatpush1.bf16.msra.mxu0 %v1015
        %1049 = vmatprep.subr.bf16.mxu0 %v1018
        %1050 = vmatpush1.bf16.msra.mxu0 %v1017
        %1051 = vmatprep.subr.bf16.mxu0 %v1020
        %1052 = vmatpush1.bf16.msra.mxu0 %v1019
        %1053 = vmatprep.subr.bf16.mxu0 %v1022
        %1054 = vmatpush1.bf16.msra.mxu0 %v1021
        %1055 = vmatprep.subr.bf16.mxu0 %v1024
        %1056 = vmatpush1.bf16.msra.mxu0 %v1023
        %1057 = vmatprep.subr.bf16.mxu0 %v1026
        %1058 = vmatpush1.bf16.msra.mxu0 %v1025
        %1059 = vmatprep.subr.bf16.mxu0 %v1028
        %1060 = vmatpush1.bf16.msra.mxu0 %v1027
        %1061 = vmatprep.subr.bf16.mxu0 %v1030
        %1062 = vmatpush1.bf16.msra.mxu0 %v1029
        %1063 = vmatprep.subr.bf16.mxu0 %v1032
        %1064 = vmatpush1.bf16.msra.mxu0 %v1031
        %1065 = vmatprep.subr.bf16.mxu0 %v1034
        %1066 = vmatpush1.bf16.msra.mxu0 %v1033
        %1067 = vmatprep.subr.bf16.mxu0 %v1036
        %1068 = vmatpush1.bf16.msra.mxu0 %v1035
        %1069 = vmatprep.subr.bf16.mxu0 %v1038
        %1070 = vmatpush1.bf16.msra.mxu0 %v1037
        %1071 = vmatprep.subr.bf16.mxu0 %v1040
        %1072 = vmatpush1.bf16.msra.mxu0 %v1039
        %1073 = vmatprep.subr.bf16.mxu0 %v1042
        %1074 = vmatpush1.bf16.msra.mxu0 %v1041
        %1075 = vmatprep.subr.bf16.mxu0 %v1044
        %1076 = vmatpush1.bf16.msra.mxu0 %v1043
        %1077 = vmatprep.mubr.bf16.mxu0 %v934
        %1078 = vmatmul.mubr.bf16.gmra.mrb[0].mxu0 %v933
        %v1079 = vpop.f32.mrb[0].mxu0
        %v1080 = vadd.f32 0.0, %v1079
        %v1081 = vpop.f32.mrb[0].mxu0
        %v1082 = vadd.f32 0.0, %v1081
        %v1083 = vpop.f32.mrb[0].mxu0
        %v1084 = vadd.f32 0.0, %v1083
        %v1085 = vpop.f32.mrb[0].mxu0
        %v1086 = vadd.f32 0.0, %v1085
        %1087 = vmatprep.mubr.bf16.mxu0 %v936
        %1088 = vmatmul.mubr.bf16.gmra.mrb[0].mxu0 %v935
        %v1089 = vpop.f32.mrb[0].mxu0
        %v1090 = vadd.f32 0.0, %v1089
        %v1091 = vpop.f32.mrb[0].mxu0
        %v1092 = vadd.f32 0.0, %v1091
        %v1093 = vpop.f32.mrb[0].mxu0
        %v1094 = vadd.f32 0.0, %v1093
        %v1095 = vpop.f32.mrb[0].mxu0
        %v1096 = vadd.f32 0.0, %v1095
        %1097 = vmatprep.mubr.bf16.mxu0 %v938
        %1098 = vmatmul.mubr.bf16.gmra.mrb[0].mxu0 %v937
        %v1099 = vpop.f32.mrb[0].mxu0
        %v1100 = vadd.f32 0.0, %v1099
        %v1101 = vpop.f32.mrb[0].mxu0
        %v1102 = vadd.f32 0.0, %v1101
        %v1103 = vpop.f32.mrb[0].mxu0
        %v1104 = vadd.f32 0.0, %v1103
        %v1105 = vpop.f32.mrb[0].mxu0
        %v1106 = vadd.f32 0.0, %v1105
        %1107 = vmatprep.mubr.bf16.mxu0 %v940
        %1108 = vmatmul.mubr.bf16.gmra.mrb[0].mxu0 %v939
        %v1109 = vpop.f32.mrb[0].mxu0
        %v1110 = vadd.f32 0.0, %v1109
        %v1111 = vpop.f32.mrb[0].mxu0
        %v1112 = vadd.f32 0.0, %v1111
        %v1113 = vpop.f32.mrb[0].mxu0
        %v1114 = vadd.f32 0.0, %v1113
        %v1115 = vpop.f32.mrb[0].mxu0
        %v1116 = vadd.f32 0.0, %v1115
        %1117 = vmatprep.mubr.bf16.mxu0 %v942
        %1118 = vmatmul.mubr.bf16.gmra.mrb[0].mxu0 %v941
        %v1119 = vpop.f32.mrb[0].mxu0
        %v1120 = vadd.f32 0.0, %v1119
        %v1121 = vpop.f32.mrb[0].mxu0
        %v1122 = vadd.f32 0.0, %v1121
        %v1123 = vpop.f32.mrb[0].mxu0
        %v1124 = vadd.f32 0.0, %v1123
        %v1125 = vpop.f32.mrb[0].mxu0
        %v1126 = vadd.f32 0.0, %v1125
        %1127 = vmatprep.mubr.bf16.mxu0 %v944
        %1128 = vmatmul.mubr.bf16.gmra.mrb[0].mxu0 %v943
        %v1129 = vpop.f32.mrb[0].mxu0
        %v1130 = vadd.f32 0.0, %v1129
        %v1131 = vpop.f32.mrb[0].mxu0
        %v1132 = vadd.f32 0.0, %v1131
        %v1133 = vpop.f32.mrb[0].mxu0
        %v1134 = vadd.f32 0.0, %v1133
        %v1135 = vpop.f32.mrb[0].mxu0
        %v1136 = vadd.f32 0.0, %v1135
        %1137 = vmatprep.mubr.bf16.mxu0 %v946
        %1138 = vmatmul.mubr.bf16.gmra.mrb[0].mxu0 %v945
        %v1139 = vpop.f32.mrb[0].mxu0
        %v1140 = vadd.f32 0.0, %v1139
        %v1141 = vpop.f32.mrb[0].mxu0
        %v1142 = vadd.f32 0.0, %v1141
        %v1143 = vpop.f32.mrb[0].mxu0
        %v1144 = vadd.f32 0.0, %v1143
        %v1145 = vpop.f32.mrb[0].mxu0
        %v1146 = vadd.f32 0.0, %v1145
        %1147 = vmatprep.mubr.bf16.mxu0 %v948
        %1148 = vmatmul.mubr.bf16.gmra.mrb[0].mxu0 %v947
        %v1149 = vpop.f32.mrb[0].mxu0
        %v1150 = vadd.f32 0.0, %v1149
        %v1151 = vpop.f32.mrb[0].mxu0
        %v1152 = vadd.f32 0.0, %v1151
        %v1153 = vpop.f32.mrb[0].mxu0
        %v1154 = vadd.f32 0.0, %v1153
        %v1155 = vpop.f32.mrb[0].mxu0
        %v1156 = vadd.f32 0.0, %v1155
        %1157 = vdwg.mxu0
        %v1158 = vrcp.pop %v823
        %v1159 = vmul.f32 5.0, %v1158
        %v1160 = vrcp.pop %v826
        %v1161 = vmul.f32 5.0, %v1160
        %v1162 = vrcp.pop %v829
        %v1163 = vmul.f32 5.0, %v1162
        %v1164 = vrcp.pop %v832
        %v1165 = vmul.f32 5.0, %v1164
        %v1166 = vrcp.pop %v835
        %v1167 = vmul.f32 5.0, %v1166
        %v1168 = vrcp.pop %v838
        %v1169 = vmul.f32 5.0, %v1168
        %v1170 = vrcp.pop %v841
        %v1171 = vmul.f32 5.0, %v1170
        %v1172 = vrcp.pop %v844
        %v1173 = vmul.f32 5.0, %v1172
        %v1174 = vrcp.pop %v847
        %v1175 = vmul.f32 5.0, %v1174
        %v1176 = vrcp.pop %v850
        %v1177 = vmul.f32 5.0, %v1176
        %v1178 = vrcp.pop %v853
        %v1179 = vmul.f32 5.0, %v1178
        %v1180 = vrcp.pop %v856
        %v1181 = vmul.f32 5.0, %v1180
        %v1182 = vrcp.pop %v859
        %v1183 = vmul.f32 5.0, %v1182
        %v1184 = vrcp.pop %v862
        %v1185 = vmul.f32 5.0, %v1184
        %v1186 = vrcp.pop %v865
        %v1187 = vmul.f32 5.0, %v1186
        %v1188 = vrcp.pop %v868
        %v1189 = vmul.f32 5.0, %v1188
        %v1190 = vmul.f32 %v1080, %v1159
        %v1191 = vmul.f32 %v1082, %v1159
        %v1192 = vmul.f32 %v1084, %v1161
        %v1193 = vmul.f32 %v1086, %v1161
        %v1194 = vmul.f32 %v1090, %v1163
        %v1195 = vmul.f32 %v1092, %v1163
        %v1196 = vmul.f32 %v1094, %v1165
        %v1197 = vmul.f32 %v1096, %v1165
        %v1198 = vmul.f32 %v1100, %v1167
        %v1199 = vmul.f32 %v1102, %v1167
        %v1200 = vmul.f32 %v1104, %v1169
        %v1201 = vmul.f32 %v1106, %v1169
        %v1202 = vmul.f32 %v1110, %v1171
        %v1203 = vmul.f32 %v1112, %v1171
        %v1204 = vmul.f32 %v1114, %v1173
        %v1205 = vmul.f32 %v1116, %v1173
        %v1206 = vmul.f32 %v1120, %v1175
        %v1207 = vmul.f32 %v1122, %v1175
        %v1208 = vmul.f32 %v1124, %v1177
        %v1209 = vmul.f32 %v1126, %v1177
        %v1210 = vmul.f32 %v1130, %v1179
        %v1211 = vmul.f32 %v1132, %v1179
        %v1212 = vmul.f32 %v1134, %v1181
        %v1213 = vmul.f32 %v1136, %v1181
        %v1214 = vmul.f32 %v1140, %v1183
        %v1215 = vmul.f32 %v1142, %v1183
        %v1216 = vmul.f32 %v1144, %v1185
        %v1217 = vmul.f32 %v1146, %v1185
        %v1218 = vmul.f32 %v1150, %v1187
        %v1219 = vmul.f32 %v1152, %v1187
        %v1220 = vmul.f32 %v1154, %v1189
        %v1221 = vmul.f32 %v1156, %v1189
        %1222 = vst [vmem:[%s351] sm:$0xff] %v1190
        %1223 = vst [vmem:[%s351 + $0x8] sm:$0xff] %v1191
        %1224 = vst [vmem:[%s351 + $0x10] sm:$0xff] %v1192
        %1225 = vst [vmem:[%s351 + $0x18] sm:$0xff] %v1193
        %1226 = vst [vmem:[%s351 + $0x20] sm:$0xff] %v1194
        %1227 = vst [vmem:[%s351 + $0x28] sm:$0xff] %v1195
        %1228 = vst [vmem:[%s351 + $0x30] sm:$0xff] %v1196
        %1229 = vst [vmem:[%s351 + $0x38] sm:$0xff] %v1197
        %1230 = vst [vmem:[%s351 + $0x40] sm:$0xff] %v1198
        %1231 = vst [vmem:[%s351 + $0x48] sm:$0xff] %v1199
        %1232 = vst [vmem:[%s351 + $0x50] sm:$0xff] %v1200
        %1233 = vst [vmem:[%s351 + $0x58] sm:$0xff] %v1201
        %1234 = vst [vmem:[%s351 + $0x60] sm:$0xff] %v1202
        %1235 = vst [vmem:[%s351 + $0x68] sm:$0xff] %v1203
        %1236 = vst [vmem:[%s351 + $0x70] sm:$0xff] %v1204
        %1237 = vst [vmem:[%s351 + $0x78] sm:$0xff] %v1205
        %1238 = vst [vmem:[%s351 + $0x80] sm:$0xff] %v1206
        %1239 = vst [vmem:[%s351 + $0x88] sm:$0xff] %v1207
        %1240 = vst [vmem:[%s351 + $0x90] sm:$0xff] %v1208
        %1241 = vst [vmem:[%s351 + $0x98] sm:$0xff] %v1209
        %1242 = vst [vmem:[%s351 + $0xa0] sm:$0xff] %v1210
        %1243 = vst [vmem:[%s351 + $0xa8] sm:$0xff] %v1211
        %1244 = vst [vmem:[%s351 + $0xb0] sm:$0xff] %v1212
        %1245 = vst [vmem:[%s351 + $0xb8] sm:$0xff] %v1213
        %1246 = vst [vmem:[%s351 + $0xc0] sm:$0xff] %v1214
        %1247 = vst [vmem:[%s351 + $0xc8] sm:$0xff] %v1215
        %1248 = vst [vmem:[%s351 + $0xd0] sm:$0xff] %v1216
        %1249 = vst [vmem:[%s351 + $0xd8] sm:$0xff] %v1217
        %1250 = vst [vmem:[%s351 + $0xe0] sm:$0xff] %v1218
        %1251 = vst [vmem:[%s351 + $0xe8] sm:$0xff] %v1219
        %1252 = vst [vmem:[%s351 + $0xf0] sm:$0xff] %v1220
        %1253 = vst [vmem:[%s351 + $0xf8] sm:$0xff] %v1221
        %s1254 = sand.u32 %s154, 1
        %s1255 = scalar_lea.sflag [#allocation4], %s1254
        %s1256 = sand.u32 %s154, 1
        %s1257 = smul.addr %s1256, 256
        %s1258 = scalar_lea.vmem [#allocation11], %s1257
        // Predicated region
        $region61: #{tpu_custom_call.1} parent=39 // pred_check
          %p1259 = pneg %p164
        $region62: #{tpu_custom_call.1} parent=39 // pred_check_branch
          %1261 = sbr.rel (%p1259) target = $region64
        $region63: #{tpu_custom_call.1} parent=39 // pred_region
          %s1262 = smul.u32 16, %s26
          %s1264 = ssub.s32 4096, 4096
          %1265 = vsyncadd %s1255, %s1264
          %s1266 = smul.addr %s1262, 2
          %s1267 = smul.addr %s1266, 128
          %s1268 = scalar_lea.hbm %s5, %s1267
          %s1269 = sshll.u32 %s1258, 4
          %s1270 = int_to_ptr.vmem [resolvable:$true] %s1269
          %1275 = dma.vmem_to_hbm [thread:$0]  %s1270, 4096, %s1268, %s1255, 256, 256, 16
        $region64: #{tpu_custom_call.1} parent=39 // pred_fallthru
          _
      $region40: #{tpu_custom_call.1} parent=5 // pred_fallthru
        _
      %p1276 = scmp.le.s32.totalorder 2, %s21
      // Predicated region
      $region65: #{tpu_custom_call.1} parent=5 // pred_check
        %p1277 = pneg %p1276
      $region66: #{tpu_custom_call.1} parent=5 // pred_check_branch
        %1279 = sbr.rel (%p1277) target = $region68
      $region67: #{tpu_custom_call.1} parent=5 // pred_region
        %s1280 = ssub.s32 %s21, 2
        // Predicated region
        $region69: #{tpu_custom_call.1} parent=67 // pred_check
          %p1281 = pneg %p170
        $region70: #{tpu_custom_call.1} parent=67 // pred_check_branch
          %1283 = sbr.rel (%p1281) target = $region72
        $region71: #{tpu_custom_call.1} parent=67 // pred_region
          %s1284 = sand.u32 %s155, 1
          %s1285 = scalar_lea.sflag [#allocation4], %s1284
          %s1286 = sand.u32 %s155, 1
          %s1287 = smul.addr %s1286, 256
          %s1288 = scalar_lea.vmem [#allocation11], %s1287
          %1289 = dma.done %s1285, 4096
        $region72: #{tpu_custom_call.1} parent=67 // pred_fallthru
          _
      $region68: #{tpu_custom_call.1} parent=5 // pred_fallthru
        _
    $region6: #{tpu_custom_call.1} parent=1 // loop_footer
      %s25 = sadd.s32 1, %s21
    $region7: #{tpu_custom_call.1} parent=1 // loop_footer_branch
      %20 = sbr.rel target = $region3
    $region8: #{tpu_custom_call.1} parent=1 // loop_exit
      _
    %1290 = vsyncpa [#allocation3], 1
    %s1291 = scalar_lea.sflag [#allocation3], 1
    %1292 = vsyncpa %s1291, 1
    %1293 = vsyncpa [#allocation6], 1
    %1294 = vsyncpa [#allocation9], 1
    %s1295 = scalar_lea.sflag [#allocation9], 1
    %1296 = vsyncpa %s1295, 1
    %1297 = vsyncpa [#allocation4], 1
    %s1298 = scalar_lea.sflag [#allocation4], 1
    %1299 = vsyncpa %s1298, 1

</llo_original>
